<compile_context>
chip_gen: v7x
topology: tpu7x:2x2x1
jax: 0.10.0
libtpu: 0.0.40
codegen_flags: <defaults>
</compile_context>

<pallas_src>
import functools
import math

import jax
import jax.numpy as jnp
from jax import lax
from jax.experimental import pallas as pl
from jax.experimental.pallas import tpu as pltpu


NEG_INF = -1e30  # applied to f32 logits only (bf16 never sees masked values)


# ----------------------------------------------------------------------------
# helpers
# ----------------------------------------------------------------------------
def _layer_norm(x, w, b, eps=1e-5):
    # x: (rows, C) f32, w/b: (1, C) f32
    mu = jnp.mean(x, axis=-1, keepdims=True)
    xc = x - mu
    var = jnp.mean(xc * xc, axis=-1, keepdims=True)
    inv = lax.rsqrt(var + eps)
    return xc * inv * w + b


def _gelu_exact(x):
    # PyTorch nn.GELU() default: exact erf formulation.
    return 0.5 * x * (1.0 + lax.erf(x * (1.0 / math.sqrt(2.0))))


def _pick_tile(n, prefs=(256, 128)):
    for p in prefs:
        if n % p == 0:
            return p
    return n


def _const_spec(shape):
    """BlockSpec for a grid-constant operand; single-buffered when supported."""
    imap = lambda *args: (0,) * len(shape)
    if hasattr(pl, "Buffered"):
        try:
            return pl.BlockSpec(shape, imap, pipeline_mode=pl.Buffered(1))
        except Exception:
            pass
    return pl.BlockSpec(shape, imap)


def _vmem_limit_bytes():
    # Generation-aware: leave headroom for compiler scratch, never request all
    # of physical VMEM (v7x has 64 MiB total; v5e/v6e have 128 MiB).
    cap = 64 * 1024 * 1024  # conservative fallback (v7x-sized)
    try:
        info = pltpu.get_tpu_info()
        cap = int(getattr(info, "vmem_capacity_bytes", cap))
    except Exception:
        pass
    return max(32 * 1024 * 1024, min(cap - 16 * 1024 * 1024, 100 * 1024 * 1024))


# ----------------------------------------------------------------------------
# Kernel 1: LN1 + fused QKV projection -> head-major bf16 q (pre-scaled), k, v
# ----------------------------------------------------------------------------
def qkv_proj_kernel(x_ref, ln1w_ref, ln1b_ref, wqkv_ref, bqkv_ref,
                    q_ref, k_ref, v_ref, *, n_head):
    tr, C = x_ref.shape[1], x_ref.shape[2]
    D = C // n_head
    scale = 1.0 / math.sqrt(D)

    x = x_ref[0].astype(jnp.float32)
    h = _layer_norm(x, ln1w_ref[...], ln1b_ref[...])
    qkv = jnp.dot(h.astype(jnp.bfloat16), wqkv_ref[...],
                  preferred_element_type=jnp.float32) + bqkv_ref[...]
    q = (qkv[:, :C] * scale).astype(jnp.bfloat16)   # softmax scale folded once
    k = qkv[:, C:2 * C].astype(jnp.bfloat16)
    v = qkv[:, 2 * C:].astype(jnp.bfloat16)
    # Split heads once per row tile: keeps lane-dim slicing out of the flash
    # inner loop; heads land contiguously in the (B,H,T,D) outputs.
    for hh in range(n_head):
        sl = slice(hh * D, (hh + 1) * D)
        q_ref[0, hh] = q[:, sl]
        k_ref[0, hh] = k[:, sl]
        v_ref[0, hh] = v[:, sl]


# ----------------------------------------------------------------------------
# Kernel 2: flash attention (online softmax) + output projection + residual 1
# ----------------------------------------------------------------------------
def flash_attn_kernel(x_ref, q_ref, k_ref, v_ref, wproj_ref, bproj_ref,
                      o_ref, m_scratch, l_scratch, acc_scratch, y_scratch,
                      *, n_head):
    qi = pl.program_id(1)
    ki = pl.program_id(2)
    nk = pl.num_programs(2)

    tq, D = q_ref.shape[2], q_ref.shape[3]
    tk = k_ref.shape[2]

    @pl.when(ki == 0)
    def _init():
        m_scratch[...] = jnp.full(m_scratch.shape, -jnp.inf, m_scratch.dtype)
        l_scratch[...] = jnp.zeros(l_scratch.shape, l_scratch.dtype)
        acc_scratch[...] = jnp.zeros(acc_scratch.shape, acc_scratch.dtype)

    first_row = qi * tq
    last_row = first_row + (tq - 1)
    first_col = ki * tk
    last_col = first_col + (tk - 1)
    fully_visible = last_col <= first_row          # below diagonal: no mask
    straddles = jnp.logical_and(first_col <= last_row,
                                jnp.logical_not(fully_visible))

    def _logits():
        # head-batched q @ k^T: (H,tq,D) x (H,tk,D) -> (H,tq,tk), f32 acc
        return jnp.einsum("hqd,hkd->hqk", q_ref[0], k_ref[0],
                          preferred_element_type=jnp.float32)

    def _update(s):
        vv = v_ref[0]                              # (H, tk, D) bf16
        m_prev = m_scratch[...]                    # (H, tq, 1)
        m_new = jnp.maximum(m_prev, jnp.max(s, axis=-1, keepdims=True))
        alpha = jnp.exp(m_prev - m_new)
        p = jnp.exp(s - m_new)                     # unnormalized probs, f32
        # TODO(synk): on v6e/v7x the exp could run in bf16 (bf16 EUP, ~2x
        # transcendental throughput); kept f32 for v5e portability/accuracy.
        l_scratch[...] = alpha * l_scratch[...] + jnp.sum(p, axis=-1, keepdims=True)
        acc_scratch[...] = alpha * acc_scratch[...] + jnp.einsum(
            "hqk,hkd->hqd", p.astype(jnp.bfloat16), vv,
            preferred_element_type=jnp.float32)
        m_scratch[...] = m_new

    @pl.when(fully_visible)
    def _below_diag():                             # fast path: no iota/mask
        _update(_logits())

    @pl.when(straddles)
    def _diag():                                   # only diagonal tiles mask
        row = first_row + lax.broadcasted_iota(jnp.int32, (tq, tk), 0)
        col = first_col + lax.broadcasted_iota(jnp.int32, (tq, tk), 1)
        mask = (col <= row)[None, :, :]
        _update(jnp.where(mask, _logits(), NEG_INF))

    @pl.when(ki == nk - 1)
    def _finalize():
        inv_l = pl.reciprocal(l_scratch[...], approx=True)      # (H, tq, 1)
        yn = (acc_scratch[...] * inv_l).astype(jnp.bfloat16)    # (H, tq, D)
        for hh in range(n_head):                                 # once per q tile
            y_scratch[:, hh * D:(hh + 1) * D] = yn[hh]
        y = jnp.dot(y_scratch[...], wproj_ref[...],
                    preferred_element_type=jnp.float32) + bproj_ref[...]
        o_ref[0] = (x_ref[0].astype(jnp.float32) + y).astype(o_ref.dtype)


# ----------------------------------------------------------------------------
# Kernel 3: LN2 + MLP (streamed over the 4C hidden axis) + residual 2
# ----------------------------------------------------------------------------
def mlp_kernel(x1_ref, ln2w_ref, ln2b_ref, wfc_ref, bfc_ref, wfp_ref, bfcp_ref,
               o_ref, hln_scratch, acc_scratch):
    j = pl.program_id(2)
    nj = pl.num_programs(2)

    @pl.when(j == 0)
    def _init():
        x1 = x1_ref[0].astype(jnp.float32)
        hln_scratch[...] = _layer_norm(
            x1, ln2w_ref[...], ln2b_ref[...]).astype(jnp.bfloat16)
        acc_scratch[...] = jnp.zeros(acc_scratch.shape, acc_scratch.dtype)

    fc = jnp.dot(hln_scratch[...], wfc_ref[...],
                 preferred_element_type=jnp.float32) + bfc_ref[...]
    g = _gelu_exact(fc)
    acc_scratch[...] += jnp.dot(g.astype(jnp.bfloat16), wfp_ref[...],
                                preferred_element_type=jnp.float32)

    @pl.when(j == nj - 1)
    def _finalize():
        o_ref[0] = (x1_ref[0].astype(jnp.float32) + acc_scratch[...]
                    + bfcp_ref[...]).astype(o_ref.dtype)


# ----------------------------------------------------------------------------
# Wrapper
# ----------------------------------------------------------------------------
def block_forward(x, params, n_head, q_block=None, kv_block=None,
                  row_block=None, mlp_hidden_block=None):
    B, T, C = x.shape
    assert C % n_head == 0
    H = n_head
    D = C // H

    tr = _pick_tile(T, prefs=(512, 256, 128)) if row_block is None else row_block
    tq = _pick_tile(T) if q_block is None else q_block
    tk = _pick_tile(T) if kv_block is None else kv_block
    t4 = (_pick_tile(4 * C, prefs=(512, 256, 128))
          if mlp_hidden_block is None else mlp_hidden_block)
    assert T % tr == 0 and T % tq == 0 and T % tk == 0 and (4 * C) % t4 == 0
    nt, nq, nk, n4 = T // tr, T // tq, T // tk, (4 * C) // t4

    wdt = jnp.bfloat16
    w_qkv = params["w_qkv"].astype(wdt)
    w_proj = params["w_proj"].astype(wdt)
    w_fc = params["w_fc"].astype(wdt)
    w_fp = params["w_fcproj"].astype(wdt)

    vmem_limit = _vmem_limit_bytes()
    itemsize = x.dtype.itemsize

    # ------------------------------------------------------------------ 1) QKV
    hm_shape = jax.ShapeDtypeStruct((B, H, T, D), jnp.bfloat16)
    hm_spec = pl.BlockSpec((1, H, tr, D), lambda b, t: (b, 0, t, 0))
    cost_qkv = pl.CostEstimate(
        flops=int(6 * B * T * C * C),
        transcendentals=int(B * T),
        bytes_accessed=int(B * T * C * itemsize + 3 * B * T * C * 2 + 6 * C * C * 2))
    q_hm, k_hm, v_hm = pl.pallas_call(
        functools.partial(qkv_proj_kernel, n_head=H),
        out_shape=(hm_shape, hm_shape, hm_shape),
        grid_spec=pltpu.PrefetchScalarGridSpec(
            num_scalar_prefetch=0,
            grid=(B, nt),
            in_specs=[
                pl.BlockSpec((1, tr, C), lambda b, t: (b, t, 0)),
                _const_spec((1, C)), _const_spec((1, C)),          # ln1 w, b
                _const_spec((C, 3 * C)), _const_spec((1, 3 * C)),  # w_qkv, b_qkv
            ],
            out_specs=(hm_spec, hm_spec, hm_spec),
        ),
        compiler_params=pltpu.CompilerParams(
            dimension_semantics=("parallel", "parallel"),
            vmem_limit_bytes=vmem_limit),
        cost_estimate=cost_qkv,
    )(x, params["ln1_w"], params["ln1_b"], w_qkv, params["b_qkv"])

    # ------------------------------------------------ 2) flash attn + proj + res
    def kv_index(b, qi, ki):
        # Clamp causally-dead (above-diagonal) tiles to the last contributing
        # block index: same block index => the pipeline skips the DMA.
        last_contrib = (qi * tq + tq - 1) // tk
        return (b, 0, jnp.minimum(ki, last_contrib), 0)

    cost_flash = pl.CostEstimate(
        flops=int(2 * B * T * T * C + 2 * B * T * C * C),   # causal-halved attn + proj
        transcendentals=int(B * H * T * T // 2),
        bytes_accessed=int(2 * B * T * C * itemsize + B * T * C * 2
                           + (nq + 1) * B * T * C * 2 + 2 * C * C))
    x1 = pl.pallas_call(
        functools.partial(flash_attn_kernel, n_head=H),
        out_shape=jax.ShapeDtypeStruct((B, T, C), x.dtype),
        grid_spec=pltpu.PrefetchScalarGridSpec(
            num_scalar_prefetch=0,
            grid=(B, nq, nk),
            in_specs=[
                pl.BlockSpec((1, tq, C), lambda b, qi, ki: (b, qi, 0)),      # x rows
                pl.BlockSpec((1, H, tq, D), lambda b, qi, ki: (b, 0, qi, 0)),  # q
                pl.BlockSpec((1, H, tk, D), kv_index),                       # k
                pl.BlockSpec((1, H, tk, D), kv_index),                       # v
                _const_spec((C, C)), _const_spec((1, C)),                    # w_proj, b
            ],
            out_specs=pl.BlockSpec((1, tq, C), lambda b, qi, ki: (b, qi, 0)),
            scratch_shapes=[
                pltpu.VMEM((H, tq, 1), jnp.float32),     # running max
                pltpu.VMEM((H, tq, 1), jnp.float32),     # running sum
                pltpu.VMEM((H, tq, D), jnp.float32),     # output accumulator
                pltpu.VMEM((tq, C), jnp.bfloat16),       # merged-head slab (bf16)
            ]),
        compiler_params=pltpu.CompilerParams(
            dimension_semantics=("parallel", "parallel", "arbitrary"),
            vmem_limit_bytes=vmem_limit),
        cost_estimate=cost_flash,
    )(x, q_hm, k_hm, v_hm, w_proj, params["b_proj"])

    # -------------------------------------------------------- 3) MLP + residual
    cost_mlp = pl.CostEstimate(
        flops=int(16 * B * T * C * C),
        transcendentals=int(4 * B * T * C + B * T),
        bytes_accessed=int(2 * B * T * C * itemsize + 16 * C * C))
    out = pl.pallas_call(
        mlp_kernel,
        out_shape=jax.ShapeDtypeStruct((B, T, C), x.dtype),
        grid_spec=pltpu.PrefetchScalarGridSpec(
            num_scalar_prefetch=0,
            grid=(B, nt, n4),
            in_specs=[
                pl.BlockSpec((1, tr, C), lambda b, t, j: (b, t, 0)),   # x1
                _const_spec((1, C)), _const_spec((1, C)),              # ln2 w, b
                pl.BlockSpec((C, t4), lambda b, t, j: (0, j)),         # w_fc slab
                pl.BlockSpec((1, t4), lambda b, t, j: (0, j)),         # b_fc slab
                pl.BlockSpec((t4, C), lambda b, t, j: (j, 0)),         # w_fcproj slab
                _const_spec((1, C)),                                   # b_fcproj
            ],
            out_specs=pl.BlockSpec((1, tr, C), lambda b, t, j: (b, t, 0)),
            scratch_shapes=[
                pltpu.VMEM((tr, C), jnp.bfloat16),   # LN2(x1), reused across j
                pltpu.VMEM((tr, C), jnp.float32),    # MLP accumulator
            ]),
        compiler_params=pltpu.CompilerParams(
            dimension_semantics=("parallel", "parallel", "arbitrary"),
            vmem_limit_bytes=vmem_limit),
        cost_estimate=cost_mlp,
    )(x1, params["ln2_w"], params["ln2_b"], w_fc, params["b_fc"],
      w_fp, params["b_fcproj"])
    return out


# ----------------------------------------------------------------------------
# Pure-JAX reference (mirrors the PyTorch Block exactly, eval mode, f32)
# ----------------------------------------------------------------------------
def block_reference(x, params, n_head):
    def ln(x, w, b):
        mu = jnp.mean(x, axis=-1, keepdims=True)
        var = jnp.mean((x - mu) ** 2, axis=-1, keepdims=True)
        return (x - mu) / jnp.sqrt(var + 1e-5) * w + b

    B, T, C = x.shape
    D = C // n_head
    h = ln(x, params["ln1_w"][0], params["ln1_b"][0])
    qkv = h @ params["w_qkv"] + params["b_qkv"][0]
    q, k, v = jnp.split(qkv, 3, axis=-1)
    q = q.reshape(B, T, n_head, D).transpose(0, 2, 1, 3)
    k = k.reshape(B, T, n_head, D).transpose(0, 2, 1, 3)
    v = v.reshape(B, T, n_head, D).transpose(0, 2, 1, 3)
    att = jnp.einsum("bhtd,bhsd->bhts", q, k) / math.sqrt(D)
    mask = jnp.tril(jnp.ones((T, T), bool))
    att = jnp.where(mask, att, -jnp.inf)
    att = jax.nn.softmax(att, axis=-1)
    y = jnp.einsum("bhts,bhsd->bhtd", att, v).transpose(0, 2, 1, 3).reshape(B, T, C)
    y = y @ params["w_proj"] + params["b_proj"][0]
    x = x + y
    h2 = ln(x, params["ln2_w"][0], params["ln2_b"][0])
    h2 = h2 @ params["w_fc"] + params["b_fc"][0]
    h2 = 0.5 * h2 * (1.0 + lax.erf(h2 / math.sqrt(2.0)))
    h2 = h2 @ params["w_fcproj"] + params["b_fcproj"][0]
    return x + h2


# ----------------------------------------------------------------------------
if __name__ == "__main__":
    B, T, C, H = 2, 16, 64, 4   # batch, seq, n_embd, n_head (D = 16)

    key = jax.random.PRNGKey(0)
    ks = jax.random.split(key, 8)

    def init_w(k, shape):
        return (0.02 * jax.random.normal(k, shape)).astype(jnp.float32)

    params = {
        "ln1_w": jnp.ones((1, C), jnp.float32),
        "ln1_b": jnp.zeros((1, C), jnp.float32),
        "w_qkv": init_w(ks[0], (C, 3 * C)),        # (in, out)
        "b_qkv": jnp.zeros((1, 3 * C), jnp.float32),
        "w_proj": init_w(ks[1], (C, C)),
        "b_proj": jnp.zeros((1, C), jnp.float32),
        "ln2_w": jnp.ones((1, C), jnp.float32),
        "ln2_b": jnp.zeros((1, C), jnp.float32),
        "w_fc": init_w(ks[2], (C, 4 * C)),
        "b_fc": jnp.zeros((1, 4 * C), jnp.float32),
        "w_fcproj": init_w(ks[3], (4 * C, C)),
        "b_fcproj": jnp.zeros((1, C), jnp.float32),
    }

    x = jax.random.normal(ks[4], (B, T, C), jnp.float32)
    ref = block_reference(x, params, n_head=H)

    # 1) default tiling (single q/kv tile, single MLP hidden slab at this T/C)
    out1 = jax.block_until_ready(block_forward(x, params, n_head=H))
    assert out1.shape == (B, T, C)
    assert jnp.allclose(out1, ref, rtol=2e-2, atol=5e-3), "mismatch (default tiling)"

    # 2) explicit small tiles: exercises the multi-KV-tile online softmax, the
    #    below-diagonal fast path, the clamped (DMA-skipping) kv index_map and
    #    the streamed 4C MLP reduction (2 q tiles x 2 kv tiles, 2 MLP slabs).
    out2 = jax.block_until_ready(
        block_forward(x, params, n_head=H, q_block=8, kv_block=8,
                      row_block=8, mlp_hidden_block=128))
    assert jnp.allclose(out2, ref, rtol=2e-2, atol=5e-3), "mismatch (tiled flash path)"

    print("KERNEL_OK")
</pallas_src>

<mosaic_0001>
module attributes {stable_mosaic.version = 11 : i64} {
  func.func @qkv_proj_kernel(%arg0: i32, %arg1: i32, %arg2: memref<1x16x64xf32, #tpu.memory_space<vmem>>, %arg3: memref<1x64xf32, #tpu.memory_space<vmem>>, %arg4: memref<1x64xf32, #tpu.memory_space<vmem>>, %arg5: memref<64x192xbf16, #tpu.memory_space<vmem>>, %arg6: memref<1x192xf32, #tpu.memory_space<vmem>>, %arg7: memref<1x4x16x16xbf16, #tpu.memory_space<vmem>>, %arg8: memref<1x4x16x16xbf16, #tpu.memory_space<vmem>>, %arg9: memref<1x4x16x16xbf16, #tpu.memory_space<vmem>>) attributes {dimension_semantics = [#tpu.dimension_semantics<parallel>, #tpu.dimension_semantics<parallel>], iteration_bounds = array<i64: 2, 1>, scalar_prefetch = 0 : i64, scratch_operands = 0 : i64, tpu.core_type = #tpu.core_type<tc>, window_params = [{transform_indices = @transform_0, window_bounds = array<i64: 1, 16, 64>}, {pipeline_mode = #tpu.pipeline_mode<synchronous>, transform_indices = @transform_1, window_bounds = array<i64: 1, 64>}, {pipeline_mode = #tpu.pipeline_mode<synchronous>, transform_indices = @transform_2, window_bounds = array<i64: 1, 64>}, {pipeline_mode = #tpu.pipeline_mode<synchronous>, transform_indices = @transform_3, window_bounds = array<i64: 64, 192>}, {pipeline_mode = #tpu.pipeline_mode<synchronous>, transform_indices = @transform_4, window_bounds = array<i64: 1, 192>}, {transform_indices = @transform_5, window_bounds = array<i64: 1, 4, 16, 16>}, {transform_indices = @transform_6, window_bounds = array<i64: 1, 4, 16, 16>}, {transform_indices = @transform_7, window_bounds = array<i64: 1, 4, 16, 16>}]} {
    %c0 = arith.constant 0 : index
    %c0_0 = arith.constant 0 : index
    %c0_1 = arith.constant 0 : index
    %0 = vector.load %arg2[%c0, %c0_0, %c0_1] : memref<1x16x64xf32, #tpu.memory_space<vmem>>, vector<1x16x64xf32>
    %1 = vector.shape_cast %0 : vector<1x16x64xf32> to vector<16x64xf32>
    %c0_2 = arith.constant 0 : index
    %c0_3 = arith.constant 0 : index
    %2 = vector.load %arg3[%c0_2, %c0_3] : memref<1x64xf32, #tpu.memory_space<vmem>>, vector<1x64xf32>
    %c0_4 = arith.constant 0 : index
    %c0_5 = arith.constant 0 : index
    %3 = vector.load %arg4[%c0_4, %c0_5] : memref<1x64xf32, #tpu.memory_space<vmem>>, vector<1x64xf32>
    %cst = arith.constant dense<0.000000e+00> : vector<16xf32>
    %4 = vector.multi_reduction <add>, %1, %cst [1] : vector<16x64xf32> to vector<16xf32>
    %5 = vector.shape_cast %4 : vector<16xf32> to vector<16x1xf32>
    %cst_6 = arith.constant 6.400000e+01 : f32
    %6 = vector.broadcast %cst_6 : f32 to vector<16x1xf32>
    %7 = arith.divf %5, %6 : vector<16x1xf32>
    %8 = vector.broadcast %7 : vector<16x1xf32> to vector<16x64xf32>
    %9 = arith.subf %1, %8 : vector<16x64xf32>
    %10 = arith.mulf %9, %9 : vector<16x64xf32>
    %cst_7 = arith.constant dense<0.000000e+00> : vector<16xf32>
    %11 = vector.multi_reduction <add>, %10, %cst_7 [1] : vector<16x64xf32> to vector<16xf32>
    %12 = vector.shape_cast %11 : vector<16xf32> to vector<16x1xf32>
    %cst_8 = arith.constant 6.400000e+01 : f32
    %13 = vector.broadcast %cst_8 : f32 to vector<16x1xf32>
    %14 = arith.divf %12, %13 : vector<16x1xf32>
    %cst_9 = arith.constant 9.99999974E-6 : f32
    %15 = vector.broadcast %cst_9 : f32 to vector<16x1xf32>
    %16 = arith.addf %14, %15 : vector<16x1xf32>
    %17 = math.rsqrt %16 : vector<16x1xf32>
    %18 = vector.broadcast %17 : vector<16x1xf32> to vector<16x64xf32>
    %19 = arith.mulf %9, %18 : vector<16x64xf32>
    %20 = vector.broadcast %2 : vector<1x64xf32> to vector<16x64xf32>
    %21 = arith.mulf %19, %20 : vector<16x64xf32>
    %22 = vector.broadcast %3 : vector<1x64xf32> to vector<16x64xf32>
    %23 = arith.addf %21, %22 : vector<16x64xf32>
    %24 = arith.truncf %23 : vector<16x64xf32> to vector<16x64xbf16>
    %c0_10 = arith.constant 0 : index
    %c0_11 = arith.constant 0 : index
    %25 = vector.load %arg5[%c0_10, %c0_11] : memref<64x192xbf16, #tpu.memory_space<vmem>>, vector<64x192xbf16>
    %cst_12 = arith.constant dense<0.000000e+00> : vector<16x192xf32>
    %26 = tpu.matmul %24, %25, %cst_12 {dimension_numbers = #tpu.dot_dimension_numbers<[1], [0], [0], [1], [0, 0, 1, 1], [], []>} : vector<16x64xbf16>, vector<64x192xbf16>, vector<16x192xf32> -> vector<16x192xf32>
    %c0_13 = arith.constant 0 : index
    %c0_14 = arith.constant 0 : index
    %27 = vector.load %arg6[%c0_13, %c0_14] : memref<1x192xf32, #tpu.memory_space<vmem>>, vector<1x192xf32>
    %28 = vector.broadcast %27 : vector<1x192xf32> to vector<16x192xf32>
    %29 = arith.addf %26, %28 : vector<16x192xf32>
    %30 = vector.extract_strided_slice %29 {offsets = [0, 0], sizes = [16, 64], strides = [1, 1]} : vector<16x192xf32> to vector<16x64xf32>
    %cst_15 = arith.constant 2.500000e-01 : f32
    %31 = vector.broadcast %cst_15 : f32 to vector<16x64xf32>
    %32 = arith.mulf %30, %31 : vector<16x64xf32>
    %33 = arith.truncf %32 : vector<16x64xf32> to vector<16x64xbf16>
    %34 = vector.extract_strided_slice %29 {offsets = [0, 64], sizes = [16, 64], strides = [1, 1]} : vector<16x192xf32> to vector<16x64xf32>
    %35 = arith.truncf %34 : vector<16x64xf32> to vector<16x64xbf16>
    %36 = vector.extract_strided_slice %29 {offsets = [0, 128], sizes = [16, 64], strides = [1, 1]} : vector<16x192xf32> to vector<16x64xf32>
    %37 = arith.truncf %36 : vector<16x64xf32> to vector<16x64xbf16>
    %38 = vector.extract_strided_slice %33 {offsets = [0, 0], sizes = [16, 16], strides = [1, 1]} : vector<16x64xbf16> to vector<16x16xbf16>
    %c0_16 = arith.constant 0 : index
    %c0_17 = arith.constant 0 : index
    %c0_18 = arith.constant 0 : index
    %c0_19 = arith.constant 0 : index
    %39 = vector.load %arg7[%c0_16, %c0_17, %c0_18, %c0_19] : memref<1x4x16x16xbf16, #tpu.memory_space<vmem>>, vector<1x1x16x16xbf16>
    %40 = vector.shape_cast %39 : vector<1x1x16x16xbf16> to vector<16x16xbf16>
    %41 = vector.shape_cast %38 : vector<16x16xbf16> to vector<1x1x16x16xbf16>
    tpu.vector_store %arg7[%c0_16, %c0_17, %c0_18, %c0_19], %41 {strides = array<i32>} : memref<1x4x16x16xbf16, #tpu.memory_space<vmem>>, vector<1x1x16x16xbf16>,
    %42 = vector.extract_strided_slice %35 {offsets = [0, 0], sizes = [16, 16], strides = [1, 1]} : vector<16x64xbf16> to vector<16x16xbf16>
    %c0_20 = arith.constant 0 : index
    %c0_21 = arith.constant 0 : index
    %c0_22 = arith.constant 0 : index
    %c0_23 = arith.constant 0 : index
    %43 = vector.load %arg8[%c0_20, %c0_21, %c0_22, %c0_23] : memref<1x4x16x16xbf16, #tpu.memory_space<vmem>>, vector<1x1x16x16xbf16>
    %44 = vector.shape_cast %43 : vector<1x1x16x16xbf16> to vector<16x16xbf16>
    %45 = vector.shape_cast %42 : vector<16x16xbf16> to vector<1x1x16x16xbf16>
    tpu.vector_store %arg8[%c0_20, %c0_21, %c0_22, %c0_23], %45 {strides = array<i32>} : memref<1x4x16x16xbf16, #tpu.memory_space<vmem>>, vector<1x1x16x16xbf16>,
    %46 = vector.extract_strided_slice %37 {offsets = [0, 0], sizes = [16, 16], strides = [1, 1]} : vector<16x64xbf16> to vector<16x16xbf16>
    %c0_24 = arith.constant 0 : index
    %c0_25 = arith.constant 0 : index
    %c0_26 = arith.constant 0 : index
    %c0_27 = arith.constant 0 : index
    %47 = vector.load %arg9[%c0_24, %c0_25, %c0_26, %c0_27] : memref<1x4x16x16xbf16, #tpu.memory_space<vmem>>, vector<1x1x16x16xbf16>
    %48 = vector.shape_cast %47 : vector<1x1x16x16xbf16> to vector<16x16xbf16>
    %49 = vector.shape_cast %46 : vector<16x16xbf16> to vector<1x1x16x16xbf16>
    tpu.vector_store %arg9[%c0_24, %c0_25, %c0_26, %c0_27], %49 {strides = array<i32>} : memref<1x4x16x16xbf16, #tpu.memory_space<vmem>>, vector<1x1x16x16xbf16>,
    %50 = vector.extract_strided_slice %33 {offsets = [0, 16], sizes = [16, 16], strides = [1, 1]} : vector<16x64xbf16> to vector<16x16xbf16>
    %c0_28 = arith.constant 0 : index
    %c1 = arith.constant 1 : index
    %c0_29 = arith.constant 0 : index
    %c0_30 = arith.constant 0 : index
    %51 = vector.load %arg7[%c0_28, %c1, %c0_29, %c0_30] : memref<1x4x16x16xbf16, #tpu.memory_space<vmem>>, vector<1x1x16x16xbf16>
    %52 = vector.shape_cast %51 : vector<1x1x16x16xbf16> to vector<16x16xbf16>
    %53 = vector.shape_cast %50 : vector<16x16xbf16> to vector<1x1x16x16xbf16>
    tpu.vector_store %arg7[%c0_28, %c1, %c0_29, %c0_30], %53 {strides = array<i32>} : memref<1x4x16x16xbf16, #tpu.memory_space<vmem>>, vector<1x1x16x16xbf16>,
    %54 = vector.extract_strided_slice %35 {offsets = [0, 16], sizes = [16, 16], strides = [1, 1]} : vector<16x64xbf16> to vector<16x16xbf16>
    %c0_31 = arith.constant 0 : index
    %c1_32 = arith.constant 1 : index
    %c0_33 = arith.constant 0 : index
    %c0_34 = arith.constant 0 : index
    %55 = vector.load %arg8[%c0_31, %c1_32, %c0_33, %c0_34] : memref<1x4x16x16xbf16, #tpu.memory_space<vmem>>, vector<1x1x16x16xbf16>
    %56 = vector.shape_cast %55 : vector<1x1x16x16xbf16> to vector<16x16xbf16>
    %57 = vector.shape_cast %54 : vector<16x16xbf16> to vector<1x1x16x16xbf16>
    tpu.vector_store %arg8[%c0_31, %c1_32, %c0_33, %c0_34], %57 {strides = array<i32>} : memref<1x4x16x16xbf16, #tpu.memory_space<vmem>>, vector<1x1x16x16xbf16>,
    %58 = vector.extract_strided_slice %37 {offsets = [0, 16], sizes = [16, 16], strides = [1, 1]} : vector<16x64xbf16> to vector<16x16xbf16>
    %c0_35 = arith.constant 0 : index
    %c1_36 = arith.constant 1 : index
    %c0_37 = arith.constant 0 : index
    %c0_38 = arith.constant 0 : index
    %59 = vector.load %arg9[%c0_35, %c1_36, %c0_37, %c0_38] : memref<1x4x16x16xbf16, #tpu.memory_space<vmem>>, vector<1x1x16x16xbf16>
    %60 = vector.shape_cast %59 : vector<1x1x16x16xbf16> to vector<16x16xbf16>
    %61 = vector.shape_cast %58 : vector<16x16xbf16> to vector<1x1x16x16xbf16>
    tpu.vector_store %arg9[%c0_35, %c1_36, %c0_37, %c0_38], %61 {strides = array<i32>} : memref<1x4x16x16xbf16, #tpu.memory_space<vmem>>, vector<1x1x16x16xbf16>,
    %62 = vector.extract_strided_slice %33 {offsets = [0, 32], sizes = [16, 16], strides = [1, 1]} : vector<16x64xbf16> to vector<16x16xbf16>
    %c0_39 = arith.constant 0 : index
    %c2 = arith.constant 2 : index
    %c0_40 = arith.constant 0 : index
    %c0_41 = arith.constant 0 : index
    %63 = vector.load %arg7[%c0_39, %c2, %c0_40, %c0_41] : memref<1x4x16x16xbf16, #tpu.memory_space<vmem>>, vector<1x1x16x16xbf16>
    %64 = vector.shape_cast %63 : vector<1x1x16x16xbf16> to vector<16x16xbf16>
    %65 = vector.shape_cast %62 : vector<16x16xbf16> to vector<1x1x16x16xbf16>
    tpu.vector_store %arg7[%c0_39, %c2, %c0_40, %c0_41], %65 {strides = array<i32>} : memref<1x4x16x16xbf16, #tpu.memory_space<vmem>>, vector<1x1x16x16xbf16>,
    %66 = vector.extract_strided_slice %35 {offsets = [0, 32], sizes = [16, 16], strides = [1, 1]} : vector<16x64xbf16> to vector<16x16xbf16>
    %c0_42 = arith.constant 0 : index
    %c2_43 = arith.constant 2 : index
    %c0_44 = arith.constant 0 : index
    %c0_45 = arith.constant 0 : index
    %67 = vector.load %arg8[%c0_42, %c2_43, %c0_44, %c0_45] : memref<1x4x16x16xbf16, #tpu.memory_space<vmem>>, vector<1x1x16x16xbf16>
    %68 = vector.shape_cast %67 : vector<1x1x16x16xbf16> to vector<16x16xbf16>
    %69 = vector.shape_cast %66 : vector<16x16xbf16> to vector<1x1x16x16xbf16>
    tpu.vector_store %arg8[%c0_42, %c2_43, %c0_44, %c0_45], %69 {strides = array<i32>} : memref<1x4x16x16xbf16, #tpu.memory_space<vmem>>, vector<1x1x16x16xbf16>,
    %70 = vector.extract_strided_slice %37 {offsets = [0, 32], sizes = [16, 16], strides = [1, 1]} : vector<16x64xbf16> to vector<16x16xbf16>
    %c0_46 = arith.constant 0 : index
    %c2_47 = arith.constant 2 : index
    %c0_48 = arith.constant 0 : index
    %c0_49 = arith.constant 0 : index
    %71 = vector.load %arg9[%c0_46, %c2_47, %c0_48, %c0_49] : memref<1x4x16x16xbf16, #tpu.memory_space<vmem>>, vector<1x1x16x16xbf16>
    %72 = vector.shape_cast %71 : vector<1x1x16x16xbf16> to vector<16x16xbf16>
    %73 = vector.shape_cast %70 : vector<16x16xbf16> to vector<1x1x16x16xbf16>
    tpu.vector_store %arg9[%c0_46, %c2_47, %c0_48, %c0_49], %73 {strides = array<i32>} : memref<1x4x16x16xbf16, #tpu.memory_space<vmem>>, vector<1x1x16x16xbf16>,
    %74 = vector.extract_strided_slice %33 {offsets = [0, 48], sizes = [16, 16], strides = [1, 1]} : vector<16x64xbf16> to vector<16x16xbf16>
    %c0_50 = arith.constant 0 : index
    %c3 = arith.constant 3 : index
    %c0_51 = arith.constant 0 : index
    %c0_52 = arith.constant 0 : index
    %75 = vector.load %arg7[%c0_50, %c3, %c0_51, %c0_52] : memref<1x4x16x16xbf16, #tpu.memory_space<vmem>>, vector<1x1x16x16xbf16>
    %76 = vector.shape_cast %75 : vector<1x1x16x16xbf16> to vector<16x16xbf16>
    %77 = vector.shape_cast %74 : vector<16x16xbf16> to vector<1x1x16x16xbf16>
    tpu.vector_store %arg7[%c0_50, %c3, %c0_51, %c0_52], %77 {strides = array<i32>} : memref<1x4x16x16xbf16, #tpu.memory_space<vmem>>, vector<1x1x16x16xbf16>,
    %78 = vector.extract_strided_slice %35 {offsets = [0, 48], sizes = [16, 16], strides = [1, 1]} : vector<16x64xbf16> to vector<16x16xbf16>
    %c0_53 = arith.constant 0 : index
    %c3_54 = arith.constant 3 : index
    %c0_55 = arith.constant 0 : index
    %c0_56 = arith.constant 0 : index
    %79 = vector.load %arg8[%c0_53, %c3_54, %c0_55, %c0_56] : memref<1x4x16x16xbf16, #tpu.memory_space<vmem>>, vector<1x1x16x16xbf16>
    %80 = vector.shape_cast %79 : vector<1x1x16x16xbf16> to vector<16x16xbf16>
    %81 = vector.shape_cast %78 : vector<16x16xbf16> to vector<1x1x16x16xbf16>
    tpu.vector_store %arg8[%c0_53, %c3_54, %c0_55, %c0_56], %81 {strides = array<i32>} : memref<1x4x16x16xbf16, #tpu.memory_space<vmem>>, vector<1x1x16x16xbf16>,
    %82 = vector.extract_strided_slice %37 {offsets = [0, 48], sizes = [16, 16], strides = [1, 1]} : vector<16x64xbf16> to vector<16x16xbf16>
    %c0_57 = arith.constant 0 : index
    %c3_58 = arith.constant 3 : index
    %c0_59 = arith.constant 0 : index
    %c0_60 = arith.constant 0 : index
    %83 = vector.load %arg9[%c0_57, %c3_58, %c0_59, %c0_60] : memref<1x4x16x16xbf16, #tpu.memory_space<vmem>>, vector<1x1x16x16xbf16>
    %84 = vector.shape_cast %83 : vector<1x1x16x16xbf16> to vector<16x16xbf16>
    %85 = vector.shape_cast %82 : vector<16x16xbf16> to vector<1x1x16x16xbf16>
    tpu.vector_store %arg9[%c0_57, %c3_58, %c0_59, %c0_60], %85 {strides = array<i32>} : memref<1x4x16x16xbf16, #tpu.memory_space<vmem>>, vector<1x1x16x16xbf16>,
    return
  }
  func.func @transform_0(%arg0: i32, %arg1: i32) -> (i32, i32, i32) {
    %c0_i32 = arith.constant 0 : i32
    %c0_i32_0 = arith.constant 0 : i32
    return %arg0, %arg1, %c0_i32 : i32, i32, i32
  }
  func.func @transform_1(%arg0: i32, %arg1: i32) -> (i32, i32) {
    %c0_i32 = arith.constant 0 : i32
    %c0_i32_0 = arith.constant 0 : i32
    %c0_i32_1 = arith.constant 0 : i32
    return %c0_i32, %c0_i32_0 : i32, i32
  }
  func.func @transform_2(%arg0: i32, %arg1: i32) -> (i32, i32) {
    %c0_i32 = arith.constant 0 : i32
    %c0_i32_0 = arith.constant 0 : i32
    %c0_i32_1 = arith.constant 0 : i32
    return %c0_i32, %c0_i32_0 : i32, i32
  }
  func.func @transform_3(%arg0: i32, %arg1: i32) -> (i32, i32) {
    %c0_i32 = arith.constant 0 : i32
    %c0_i32_0 = arith.constant 0 : i32
    %c0_i32_1 = arith.constant 0 : i32
    return %c0_i32, %c0_i32_0 : i32, i32
  }
  func.func @transform_4(%arg0: i32, %arg1: i32) -> (i32, i32) {
    %c0_i32 = arith.constant 0 : i32
    %c0_i32_0 = arith.constant 0 : i32
    %c0_i32_1 = arith.constant 0 : i32
    return %c0_i32, %c0_i32_0 : i32, i32
  }
  func.func @transform_5(%arg0: i32, %arg1: i32) -> (i32, i32, i32, i32) {
    %c0_i32 = arith.constant 0 : i32
    %c0_i32_0 = arith.constant 0 : i32
    %c0_i32_1 = arith.constant 0 : i32
    return %arg0, %c0_i32, %arg1, %c0_i32_0 : i32, i32, i32, i32
  }
  func.func @transform_6(%arg0: i32, %arg1: i32) -> (i32, i32, i32, i32) {
    %c0_i32 = arith.constant 0 : i32
    %c0_i32_0 = arith.constant 0 : i32
    %c0_i32_1 = arith.constant 0 : i32
    return %arg0, %c0_i32, %arg1, %c0_i32_0 : i32, i32, i32, i32
  }
  func.func @transform_7(%arg0: i32, %arg1: i32) -> (i32, i32, i32, i32) {
    %c0_i32 = arith.constant 0 : i32
    %c0_i32_0 = arith.constant 0 : i32
    %c0_i32_1 = arith.constant 0 : i32
    return %arg0, %c0_i32, %arg1, %c0_i32_0 : i32, i32, i32, i32
  }
}

</mosaic_0001>

<llo_original>
// kernel: tpu_custom_call.1
$region0: #{tpu_custom_call.1}
  #allocation0 [shape = 'u32[]', space=smem, size = 0x4, offset = 0x4, fixed_abs, tag = 'smem constant byte address 0x4 - core index']
  #allocation1 [shape = 'u32[144,128]{1,0:T(1,128)}', space=vmem, size = 0x12000, scoped, tag = 'internal scratch']
  %s0 = inlined_call_operand.hbm [shape: f32[2,16,64], index: 0, kind: input, shape index: {}]
  %s1 = inlined_call_operand.vmem [shape: f32[1,64], index: 1, kind: input, shape index: {}]
  %s2 = inlined_call_operand.vmem [shape: f32[1,64], index: 2, kind: input, shape index: {}]
  %s3 = inlined_call_operand.hbm [shape: bf16[64,192], index: 3, kind: input, shape index: {}]
  %s4 = inlined_call_operand.vmem [shape: f32[1,192], index: 4, kind: input, shape index: {}]
  %s5 = inlined_call_operand.hbm [shape: bf16[2,4,16,16], index: 5, kind: output, shape index: {0}]
  %s6 = inlined_call_operand.hbm [shape: bf16[2,4,16,16], index: 6, kind: output, shape index: {1}]
  %s7 = inlined_call_operand.hbm [shape: bf16[2,4,16,16], index: 7, kind: output, shape index: {2}]
  %8 = xla_tuple %s5, %s6, %s7
  %s9 = sld [smem:[#allocation0]]
  $region77: #{tpu_custom_call.1} parent=0
    _
  %s11 = ssub.s32 1, %s9
  %s12 = scalar_select 0, %s11, %s9
  $region1: #{tpu_custom_call.1} parent=0
    #allocation2 [shape = 'u8[16384]{0}', space=vmem, size = 0x4000, scoped, tag = 'input window, operand 0']
    #allocation3 [shape = 's32[2]{0}', space=sflag, size = 0x8, scoped, tag = 'scoped memory for tpu_custom_call.1']
    #allocation4 [shape = 's32[2]{0}', space=sflag, size = 0x8, scoped, tag = 'scoped memory for tpu_custom_call.1']
    #allocation5 [shape = 'u8[32768]{0}', space=vmem, size = 0x8000, scoped, tag = 'input window, operand 3, single buffered']
    #allocation6 [shape = 's32[1]{0}', space=sflag, size = 0x4, scoped, tag = 'scoped memory for tpu_custom_call.1']
    #allocation7 [shape = 'u8[32768]{0}', space=vmem, size = 0x8000, scoped, tag = 'output window, operand 0']
    #allocation8 [shape = 'u8[32768]{0}', space=vmem, size = 0x8000, scoped, tag = 'output window, operand 1']
    #allocation9 [shape = 's32[2]{0}', space=sflag, size = 0x8, scoped, tag = 'scoped memory for tpu_custom_call.1']
    #allocation10 [shape = 'u8[32768]{0}', space=vmem, size = 0x8000, scoped, tag = 'output window, operand 2']
    %13 = vsyncpa [#allocation3], 0
    %s14 = scalar_lea.sflag [#allocation3], 1
    %15 = vsyncpa %s14, 0
    %16 = vsyncpa [#allocation6], 0
    %17 = vsyncpa [#allocation4], 0
    %s18 = scalar_lea.sflag [#allocation4], 1
    %19 = vsyncpa %s18, 0
    %20 = vsyncpa [#allocation9], 0
    %s21 = scalar_lea.sflag [#allocation9], 1
    %22 = vsyncpa %s21, 0
    loop: start=0, step=1, limit=4
    $region2: #{tpu_custom_call.1} parent=1 // loop_pre_header
      _
    $region3: #{tpu_custom_call.1} parent=1 // loop_header
      %s24 = sphi 0, %s28
      %p25 = scmp.ge.s32.totalorder %s24, 4
      %s31 = sphi 0, %s43
      %s32 = sphi 0, %s39
      %s33 = sphi 0, %s31
      %s34 = sphi 0, %s32
      %s35 = sphi 0, %s33
      %s36 = sphi 0, %s34
      %s48 = sphi 0, %s50
      %s51 = sphi 0, %s48
      %s52 = sphi 0, %s51
      %s68 = sphi 0, %s52
      %s72 = sphi 0, %s72
      %s74 = sphi 0, %s72
      %s75 = sphi 0, %s74
      %s89 = sphi 0, %s75
      %s93 = sphi 0, %s93
      %s95 = sphi 0, %s93
      %s96 = sphi 0, %s95
      %s110 = sphi 0, %s96
      %s114 = sphi 0, %s114
      %s116 = sphi 0, %s114
      %s117 = sphi 0, %s116
      %s131 = sphi 0, %s117
      %s135 = sphi 0, %s135
      %s137 = sphi 0, %s135
      %s138 = sphi 0, %s137
      %s152 = sphi 0, %s138
      %s160 = sphi 0, %s162
      %s163 = sphi 0, %s160
      %s164 = sphi 0, %s163
      %s180 = sphi 0, %s164
      %s188 = sphi 0, %s190
      %s191 = sphi 0, %s188
      %s192 = sphi 0, %s191
      %s208 = sphi 0, %s192
      %s216 = sphi 0, %s218
      %s219 = sphi 0, %s216
      %s220 = sphi 0, %s219
      %s236 = sphi 0, %s220
    $region4: #{tpu_custom_call.1} parent=1 // loop_header_branch
      %27 = sbr.rel (%p25) target = $region8
    $region5: #{tpu_custom_call.1} parent=1 // loop_body
      %s29 = ssub.s32 %s24, 1
      %s30 = ssub.s32 %s24, 2
      %s37 = sadd.s32 1, %s32
      %p38 = scmp.ge.s32.totalorder %s37, 1
      %s39 = scalar_select %p38, 0, %s37
      %s40 = sadd.s32 1, %s31
      %s41 = scalar_select %p38, %s40, %s31
      %p42 = scmp.ge.s32.totalorder %s41, 2
      %s43 = scalar_select %p42, 0, %s41
      %s44 = ssub.s32 %s31, %s43
      %s45 = ssub.s32 %s32, %s39
      %s46 = sor.u32 %s44, %s45
      %p47 = scmp.eq.s32.totalorder %s46, 0
      %s49 = sadd.s32 %s48, 1
      %s50 = scalar_select %p47, %s48, %s49
      %p53 = pneg %p47
      %p54 = scmp.eq.s32.totalorder %s24, 1
      %p55 = por %p53, %p54
      %p56 = scmp.ne.s32.totalorder %s48, %s51
      %p57 = scmp.eq.s32.totalorder %s24, 0
      %p58 = por %p56, %p57
      %p59 = scmp.ne.s32.totalorder %s48, %s51
      %p60 = scmp.eq.s32.totalorder %s29, 1
      %p61 = por %p59, %p60
      %p62 = scmp.ne.s32.totalorder %s51, %s52
      %p63 = scmp.eq.s32.totalorder %s29, 0
      %p64 = por %p62, %p63
      %p65 = scmp.ne.s32.totalorder %s51, %s52
      %p66 = scmp.eq.s32.totalorder %s30, 1
      %p67 = por %p65, %p66
      %p69 = scmp.ne.s32.totalorder %s52, %s68
      %p70 = scmp.eq.s32.totalorder %s30, 0
      %p71 = por %p69, %p70
      %s73 = sadd.s32 %s72, 1
      %p76 = scmp.eq.s32.totalorder %s24, 1
      %p77 = scmp.ne.s32.totalorder %s72, %s74
      %p78 = scmp.eq.s32.totalorder %s24, 0
      %p79 = por %p77, %p78
      %p80 = scmp.ne.s32.totalorder %s72, %s74
      %p81 = scmp.eq.s32.totalorder %s29, 1
      %p82 = por %p80, %p81
      %p83 = scmp.ne.s32.totalorder %s74, %s75
      %p84 = scmp.eq.s32.totalorder %s29, 0
      %p85 = por %p83, %p84
      %p86 = scmp.ne.s32.totalorder %s74, %s75
      %p87 = scmp.eq.s32.totalorder %s30, 1
      %p88 = por %p86, %p87
      %p90 = scmp.ne.s32.totalorder %s75, %s89
      %p91 = scmp.eq.s32.totalorder %s30, 0
      %p92 = por %p90, %p91
      %s94 = sadd.s32 %s93, 1
      %p97 = scmp.eq.s32.totalorder %s24, 1
      %p98 = scmp.ne.s32.totalorder %s93, %s95
      %p99 = scmp.eq.s32.totalorder %s24, 0
      %p100 = por %p98, %p99
      %p101 = scmp.ne.s32.totalorder %s93, %s95
      %p102 = scmp.eq.s32.totalorder %s29, 1
      %p103 = por %p101, %p102
      %p104 = scmp.ne.s32.totalorder %s95, %s96
      %p105 = scmp.eq.s32.totalorder %s29, 0
      %p106 = por %p104, %p105
      %p107 = scmp.ne.s32.totalorder %s95, %s96
      %p108 = scmp.eq.s32.totalorder %s30, 1
      %p109 = por %p107, %p108
      %p111 = scmp.ne.s32.totalorder %s96, %s110
      %p112 = scmp.eq.s32.totalorder %s30, 0
      %p113 = por %p111, %p112
      %s115 = sadd.s32 %s114, 1
      %p118 = scmp.eq.s32.totalorder %s24, 1
      %p119 = scmp.ne.s32.totalorder %s114, %s116
      %p120 = scmp.eq.s32.totalorder %s24, 0
      %p121 = por %p119, %p120
      %p122 = scmp.ne.s32.totalorder %s114, %s116
      %p123 = scmp.eq.s32.totalorder %s29, 1
      %p124 = por %p122, %p123
      %p125 = scmp.ne.s32.totalorder %s116, %s117
      %p126 = scmp.eq.s32.totalorder %s29, 0
      %p127 = por %p125, %p126
      %p128 = scmp.ne.s32.totalorder %s116, %s117
      %p129 = scmp.eq.s32.totalorder %s30, 1
      %p130 = por %p128, %p129
      %p132 = scmp.ne.s32.totalorder %s117, %s131
      %p133 = scmp.eq.s32.totalorder %s30, 0
      %p134 = por %p132, %p133
      %s136 = sadd.s32 %s135, 1
      %p139 = scmp.eq.s32.totalorder %s24, 1
      %p140 = scmp.ne.s32.totalorder %s135, %s137
      %p141 = scmp.eq.s32.totalorder %s24, 0
      %p142 = por %p140, %p141
      %p143 = scmp.ne.s32.totalorder %s135, %s137
      %p144 = scmp.eq.s32.totalorder %s29, 1
      %p145 = por %p143, %p144
      %p146 = scmp.ne.s32.totalorder %s137, %s138
      %p147 = scmp.eq.s32.totalorder %s29, 0
      %p148 = por %p146, %p147
      %p149 = scmp.ne.s32.totalorder %s137, %s138
      %p150 = scmp.eq.s32.totalorder %s30, 1
      %p151 = por %p149, %p150
      %p153 = scmp.ne.s32.totalorder %s138, %s152
      %p154 = scmp.eq.s32.totalorder %s30, 0
      %p155 = por %p153, %p154
      %s156 = ssub.s32 %s31, %s43
      %s157 = ssub.s32 %s32, %s39
      %s158 = sor.u32 %s156, %s157
      %p159 = scmp.eq.s32.totalorder %s158, 0
      %s161 = sadd.s32 %s160, 1
      %s162 = scalar_select %p159, %s160, %s161
      %p165 = pneg %p159
      %p166 = scmp.eq.s32.totalorder %s24, 1
      %p167 = por %p165, %p166
      %p168 = scmp.ne.s32.totalorder %s160, %s163
      %p169 = scmp.eq.s32.totalorder %s24, 0
      %p170 = por %p168, %p169
      %p171 = scmp.ne.s32.totalorder %s160, %s163
      %p172 = scmp.eq.s32.totalorder %s29, 1
      %p173 = por %p171, %p172
      %p174 = scmp.ne.s32.totalorder %s163, %s164
      %p175 = scmp.eq.s32.totalorder %s29, 0
      %p176 = por %p174, %p175
      %p177 = scmp.ne.s32.totalorder %s163, %s164
      %p178 = scmp.eq.s32.totalorder %s30, 1
      %p179 = por %p177, %p178
      %p181 = scmp.ne.s32.totalorder %s164, %s180
      %p182 = scmp.eq.s32.totalorder %s30, 0
      %p183 = por %p181, %p182
      %s184 = ssub.s32 %s31, %s43
      %s185 = ssub.s32 %s32, %s39
      %s186 = sor.u32 %s184, %s185
      %p187 = scmp.eq.s32.totalorder %s186, 0
      %s189 = sadd.s32 %s188, 1
      %s190 = scalar_select %p187, %s188, %s189
      %p193 = pneg %p187
      %p194 = scmp.eq.s32.totalorder %s24, 1
      %p195 = por %p193, %p194
      %p196 = scmp.ne.s32.totalorder %s188, %s191
      %p197 = scmp.eq.s32.totalorder %s24, 0
      %p198 = por %p196, %p197
      %p199 = scmp.ne.s32.totalorder %s188, %s191
      %p200 = scmp.eq.s32.totalorder %s29, 1
      %p201 = por %p199, %p200
      %p202 = scmp.ne.s32.totalorder %s191, %s192
      %p203 = scmp.eq.s32.totalorder %s29, 0
      %p204 = por %p202, %p203
      %p205 = scmp.ne.s32.totalorder %s191, %s192
      %p206 = scmp.eq.s32.totalorder %s30, 1
      %p207 = por %p205, %p206
      %p209 = scmp.ne.s32.totalorder %s192, %s208
      %p210 = scmp.eq.s32.totalorder %s30, 0
      %p211 = por %p209, %p210
      %s212 = ssub.s32 %s31, %s43
      %s213 = ssub.s32 %s32, %s39
      %s214 = sor.u32 %s212, %s213
      %p215 = scmp.eq.s32.totalorder %s214, 0
      %s217 = sadd.s32 %s216, 1
      %s218 = scalar_select %p215, %s216, %s217
      %p221 = pneg %p215
      %p222 = scmp.eq.s32.totalorder %s24, 1
      %p223 = por %p221, %p222
      %p224 = scmp.ne.s32.totalorder %s216, %s219
      %p225 = scmp.eq.s32.totalorder %s24, 0
      %p226 = por %p224, %p225
      %p227 = scmp.ne.s32.totalorder %s216, %s219
      %p228 = scmp.eq.s32.totalorder %s29, 1
      %p229 = por %p227, %p228
      %p230 = scmp.ne.s32.totalorder %s219, %s220
      %p231 = scmp.eq.s32.totalorder %s29, 0
      %p232 = por %p230, %p231
      %p233 = scmp.ne.s32.totalorder %s219, %s220
      %p234 = scmp.eq.s32.totalorder %s30, 1
      %p235 = por %p233, %p234
      %p237 = scmp.ne.s32.totalorder %s220, %s236
      %p238 = scmp.eq.s32.totalorder %s30, 0
      %p239 = por %p237, %p238
      %p240 = scmp.le.s32.totalorder 1, %s24
      %p241 = scmp.lt.s32.totalorder %s24, 3
      %p242 = pnand %p240, %p241
      %p243 = pneg %p242
      // Predicated region
      $region9: #{tpu_custom_call.1} parent=5 // pred_check
        _
      $region10: #{tpu_custom_call.1} parent=5 // pred_check_branch
        %245 = sbr.rel (%p242) target = $region12
      $region11: #{tpu_custom_call.1} parent=5 // pred_region
        %s246 = ssub.s32 %s24, 1
        // Predicated region
        $region13: #{tpu_custom_call.1} parent=11 // pred_check
          %p247 = pneg %p85
        $region14: #{tpu_custom_call.1} parent=11 // pred_check_branch
          %249 = sbr.rel (%p247) target = $region16
        $region15: #{tpu_custom_call.1} parent=11 // pred_region
          _
        $region16: #{tpu_custom_call.1} parent=11 // pred_fallthru
          _
        // Predicated region
        $region17: #{tpu_custom_call.1} parent=11 // pred_check
          %p250 = pneg %p106
        $region18: #{tpu_custom_call.1} parent=11 // pred_check_branch
          %252 = sbr.rel (%p250) target = $region20
        $region19: #{tpu_custom_call.1} parent=11 // pred_region
          _
        $region20: #{tpu_custom_call.1} parent=11 // pred_fallthru
          _
        // Predicated region
        $region21: #{tpu_custom_call.1} parent=11 // pred_check
          %p253 = pneg %p127
        $region22: #{tpu_custom_call.1} parent=11 // pred_check_branch
          %255 = sbr.rel (%p253) target = $region24
        $region23: #{tpu_custom_call.1} parent=11 // pred_region
          %s257 = ssub.s32 1024, 1024
          %258 = vsyncadd [#allocation6], %s257
          %s259 = sshll.u32 [#allocation5], 4
          %s260 = int_to_ptr.vmem [resolvable:$true] %s259
          %265 = dma.hbm_to_vmem [thread:$0]  %s3, 1024, %s260, [#allocation6], 128, 128, 8
        $region24: #{tpu_custom_call.1} parent=11 // pred_fallthru
          _
        // Predicated region
        $region25: #{tpu_custom_call.1} parent=11 // pred_check
          %p266 = pneg %p148
        $region26: #{tpu_custom_call.1} parent=11 // pred_check_branch
          %268 = sbr.rel (%p266) target = $region28
        $region27: #{tpu_custom_call.1} parent=11 // pred_region
          _
        $region28: #{tpu_custom_call.1} parent=11 // pred_fallthru
          _
      $region12: #{tpu_custom_call.1} parent=5 // pred_fallthru
        _
      %p269 = scmp.lt.s32.totalorder %s24, 2
      // Predicated region
      $region29: #{tpu_custom_call.1} parent=5 // pred_check
        %p270 = pneg %p269
      $region30: #{tpu_custom_call.1} parent=5 // pred_check_branch
        %272 = sbr.rel (%p270) target = $region32
      $region31: #{tpu_custom_call.1} parent=5 // pred_region
        // Predicated region
        $region33: #{tpu_custom_call.1} parent=31 // pred_check
          %p273 = pneg %p58
        $region34: #{tpu_custom_call.1} parent=31 // pred_check_branch
          %275 = sbr.rel (%p273) target = $region36
        $region35: #{tpu_custom_call.1} parent=31 // pred_region
          %s276 = sand.u32 %s48, 1
          %s277 = scalar_lea.sflag [#allocation3], %s276
          %s278 = sand.u32 %s48, 1
          %s279 = smul.addr %s278, 16
          %s280 = scalar_lea.vmem [#allocation2], %s279
          %s281 = smul.u32 2, %s32
          %s283 = ssub.s32 256, 256
          %284 = vsyncadd %s277, %s283
          %s285 = smul.addr %s31, 2
          %s286 = sadd.s32 %s281, %s285
          %s287 = smul.addr %s286, 128
          %s288 = scalar_lea.hbm %s0, %s287
          %s289 = sshll.u32 %s280, 4
          %s290 = int_to_ptr.vmem [resolvable:$true] %s289
          %295 = dma.hbm_to_vmem [thread:$0]  %s288, 256, %s290, %s277, 128, 128, 8
        $region36: #{tpu_custom_call.1} parent=31 // pred_fallthru
          _
      $region32: #{tpu_custom_call.1} parent=5 // pred_fallthru
        _
      %p296 = scmp.le.s32.totalorder 1, %s24
      %p297 = scmp.lt.s32.totalorder %s24, 3
      %p298 = pnand %p296, %p297
      %p299 = pneg %p298
      // Predicated region
      $region37: #{tpu_custom_call.1} parent=5 // pred_check
        _
      $region38: #{tpu_custom_call.1} parent=5 // pred_check_branch
        %301 = sbr.rel (%p298) target = $region40
      $region39: #{tpu_custom_call.1} parent=5 // pred_region
        %s302 = ssub.s32 %s24, 1
        %s303 = sand.u32 %s51, 1
        %s304 = scalar_lea.sflag [#allocation3], %s303
        %s305 = sand.u32 %s51, 1
        %s306 = smul.addr %s305, 16
        %s307 = scalar_lea.vmem [#allocation2], %s306
        // Predicated region
        $region41: #{tpu_custom_call.1} parent=39 // pred_check
          %p308 = pneg %p64
        $region42: #{tpu_custom_call.1} parent=39 // pred_check_branch
          %310 = sbr.rel (%p308) target = $region44
        $region43: #{tpu_custom_call.1} parent=39 // pred_region
          %311 = dma.done %s304, 256
        $region44: #{tpu_custom_call.1} parent=39 // pred_fallthru
          _
        // Predicated region
        $region45: #{tpu_custom_call.1} parent=39 // pred_check
          %p312 = pneg %p127
        $region46: #{tpu_custom_call.1} parent=39 // pred_check_branch
          %314 = sbr.rel (%p312) target = $region48
        $region47: #{tpu_custom_call.1} parent=39 // pred_region
          %315 = dma.done [#allocation6], 1024
        $region48: #{tpu_custom_call.1} parent=39 // pred_fallthru
          _
        %s316 = sand.u32 %s51, 1
        %s317 = scalar_lea.sflag [#allocation3], %s316
        %s318 = sand.u32 %s51, 1
        %s319 = smul.addr %s318, 16
        %s320 = scalar_lea.vmem [#allocation2], %s319
        %p321 = pneg %p64
        %p322 = pneg %p61
        %p323 = pneg %p85
        %p324 = pneg %p82
        %p325 = pneg %p106
        %p326 = pneg %p103
        %p327 = pneg %p127
        %p328 = pneg %p124
        %p329 = pneg %p148
        %p330 = pneg %p145
        %p331 = pneg %p176
        %p332 = pneg %p173
        %s333 = sand.u32 %s163, 1
        %s334 = scalar_lea.sflag [#allocation4], %s333
        %s335 = sand.u32 %s163, 1
        %s336 = smul.addr %s335, 32
        %s337 = scalar_lea.vmem [#allocation7], %s336
        %p338 = pneg %p204
        %p339 = pneg %p201
        %s340 = sand.u32 %s29, 1
        %s341 = scalar_lea.sflag [#allocation9], %s340
        %s342 = sand.u32 %s191, 1
        %s343 = smul.addr %s342, 32
        %s344 = scalar_lea.vmem [#allocation8], %s343
        %p345 = pneg %p232
        %p346 = pneg %p229
        %s347 = sand.u32 %s29, 1
        %s348 = scalar_lea.sflag [#allocation9], %s347
        %s349 = sand.u32 %s219, 1
        %s350 = smul.addr %s349, 32
        %s351 = scalar_lea.vmem [#allocation10], %s350
        %s352 = smul.u32 2, %s34
        %s353 = smul.u32 2, %s34
        %s354 = smul.u32 2, %s34
        %s355 = smul.u32 2, %s34
        %v357 = vld [vmem:[%s307] sm:$0xff]
        %v358 = vld [vmem:[%s307 + $0x8] sm:$0xff]
        %v359 = vld [vmem:[%s1] sm:$0x1]
        %v360 = vld [vmem:[%s2] sm:$0x1]
        %vm361 = vcmask 523264
        %v362 = vsel %vm361, %v357, 0.0
        %363 = vadd.xlane.f32.xlu0 %v362
        %v364 = vpop.xlane.xlu0 %363
        %v365 = vsel %vm361, %v358, 0.0
        %366 = vadd.xlane.f32.xlu0 %v365
        %v367 = vpop.xlane.xlu0 %366
        %v368 = vrcp.pop 64.0
        %v369 = vmul.f32 %v364, %v368
        %v370 = vmul.f32 %v367, %v368
        %v371 = vsub.f32 %v357, %v369
        %v372 = vsub.f32 %v358, %v370
        %v373 = vmul.f32 %v371, %v371
        %v374 = vmul.f32 %v372, %v372
        %v375 = vsel %vm361, %v373, 0.0
        %376 = vadd.xlane.f32.xlu0 %v375
        %v377 = vpop.xlane.xlu0 %376
        %v378 = vsel %vm361, %v374, 0.0
        %379 = vadd.xlane.f32.xlu0 %v378
        %v380 = vpop.xlane.xlu0 %379
        %v381 = vmul.f32 %v377, %v368
        %v382 = vmul.f32 %v380, %v368
        %v383 = vadd.f32 %v381, 1e-05
        %v384 = vadd.f32 %v382, 1e-05
        %v385 = vrsqrt.pop %v383
        %v386 = vrsqrt.pop %v384
        %v387 = vmul.f32 %v371, %v385
        %v388 = vmul.f32 %v372, %v386
        %v390 = vlaneseq
        %v391 = vshrl.u32 %v390, 7
        %v392 = vsub.s32 0, %v391
        %v393 = vrot.slane %v359, %v392
        %v395 = vmul.f32 %v387, %v393
        %v396 = vmul.f32 %v388, %v393
        %v398 = vlaneseq
        %v399 = vshrl.u32 %v398, 7
        %v400 = vsub.s32 0, %v399
        %v401 = vrot.slane %v360, %v400
        %v403 = vadd.f32 %v395, %v401
        %v404 = vadd.f32 %v396, %v401
        %v405 = vpack.c.bf16 %v404, %v403
        %v406 = vld [vmem:[#allocation5] sm:$0xff]
        %v407 = vld [vmem:[#allocation5 + $0x8] sm:$0xff]
        %v408 = vld [vmem:[#allocation5 + $0x10] sm:$0xff]
        %v409 = vld [vmem:[#allocation5 + $0x18] sm:$0xff]
        %v410 = vld [vmem:[#allocation5 + $0x20] sm:$0xff]
        %v411 = vld [vmem:[#allocation5 + $0x28] sm:$0xff]
        %v412 = vld [vmem:[#allocation5 + $0x30] sm:$0xff]
        %v413 = vld [vmem:[#allocation5 + $0x38] sm:$0xff]
        %v414 = vld [vmem:[%s4] sm:$0x3]
        %v416 = vlaneseq
        %v417 = vshrl.u32 %v416, 7
        %v418 = vsub.s32 0, %v417
        %v419 = vrot.slane %v414, %v418
        %v420 = vlaneseq
        %v421 = vshrl.u32 %v420, 7
        %v422 = vsub.s32 1, %v421
        %v423 = vrot.slane %v414, %v422
        %v434 = vunpack.c.l.b16 %v406
        %v435 = vunpack.c.h.b16 %v406
        %v436 = vunpack.c.l.b16 %v407
        %v437 = vunpack.c.h.b16 %v407
        %v438 = vunpack.c.l.b16 %v408
        %v439 = vunpack.c.h.b16 %v408
        %v440 = vunpack.c.l.b16 %v409
        %v441 = vunpack.c.h.b16 %v409
        %v442 = vunpack.c.l.b16 %v410
        %v443 = vunpack.c.h.b16 %v410
        %v444 = vunpack.c.l.b16 %v411
        %v445 = vunpack.c.h.b16 %v411
        %v446 = vunpack.c.l.b16 %v412
        %v447 = vunpack.c.h.b16 %v412
        %v448 = vunpack.c.l.b16 %v413
        %v449 = vunpack.c.h.b16 %v413
        %v450 = vpack.c.b16 %v436, %v434
        %v451 = vpack.c.b16 %v437, %v435
        %v452 = vpack.c.b16 %v440, %v438
        %v453 = vpack.c.b16 %v441, %v439
        %v454 = vpack.c.b16 %v444, %v442
        %v455 = vpack.c.b16 %v445, %v443
        %v456 = vpack.c.b16 %v448, %v446
        %v457 = vpack.c.b16 %v449, %v447
        %v467 = vsel %vm361, %v405, 0
        %469 = vmatprep.subr.bf16.mxu0 %v451
        %470 = vmatpush1.bf16.msra.mxu0 %v450
        %471 = vmatprep.subr.bf16.mxu0 %v453
        %472 = vmatpush1.bf16.msra.mxu0 %v452
        %473 = vmatprep.subr.bf16.mxu0 %v455
        %474 = vmatpush1.bf16.msra.mxu0 %v454
        %475 = vmatprep.subr.bf16.mxu0 %v457
        %476 = vmatpush1.bf16.msra.mxu0 %v456
        %477 = vmatprep.subr.bf16.mxu0 0
        %478 = vmatpush1.bf16.msra.mxu0 0
        %479 = vmatprep.subr.bf16.mxu0 0
        %480 = vmatpush1.bf16.msra.mxu0 0
        %481 = vmatprep.subr.bf16.mxu0 0
        %482 = vmatpush1.bf16.msra.mxu0 0
        %483 = vmatprep.subr.bf16.mxu0 0
        %484 = vmatpush1.bf16.msra.mxu0 0
        %485 = vmatprep.subr.bf16.mxu0 0
        %486 = vmatpush1.bf16.msra.mxu0 0
        %487 = vmatprep.subr.bf16.mxu0 0
        %488 = vmatpush1.bf16.msra.mxu0 0
        %489 = vmatprep.subr.bf16.mxu0 0
        %490 = vmatpush1.bf16.msra.mxu0 0
        %491 = vmatprep.subr.bf16.mxu0 0
        %492 = vmatpush1.bf16.msra.mxu0 0
        %493 = vmatprep.subr.bf16.mxu0 0
        %494 = vmatpush1.bf16.msra.mxu0 0
        %495 = vmatprep.subr.bf16.mxu0 0
        %496 = vmatpush1.bf16.msra.mxu0 0
        %497 = vmatprep.subr.bf16.mxu0 0
        %498 = vmatpush1.bf16.msra.mxu0 0
        %499 = vmatprep.subr.bf16.mxu0 0
        %500 = vmatpush1.bf16.msra.mxu0 0
        %501 = vmatprep.mubr.bf16.mxu0 0
        %502 = vmatmul.mubr.bf16.gmra.mrb[0].mxu0 %v467
        %v503 = vpop.f32.mrb[0].mxu0
        %v504 = vadd.f32 %v419, %v503
        %v505 = vpop.f32.mrb[0].mxu0
        %v506 = vadd.f32 %v423, %v505
        %v507 = vpop.f32.mrb[0].mxu0
        %v508 = vadd.f32 %v419, %v507
        %v509 = vpop.f32.mrb[0].mxu0
        %v510 = vadd.f32 %v423, %v509
        %511 = vdwg.mxu0
        %v512 = vmul.f32 %v504, 0.25
        %v513 = vmul.f32 %v508, 0.25
        %v514 = vpack.c.bf16 %v513, %v512
        %v515 = vpack.c.bf16 %v508, %v504
        %v516 = vpack.c.bf16 %v510, %v506
        %v518 = vunpack.c.l.b16 %v514
        %v519 = vunpack.c.h.b16 %v514
        %v520 = vpack.c.b16 %v518, %v518
        %v521 = vpack.c.b16 %v519, %v519
        %vm524 = vcmask 125952
        %525 = vst.msk [vmem:[%s337] sm:$0xf] %vm524, %v520
        %526 = vst.msk [vmem:[%s337 + $0x4] sm:$0xf] %vm524, %v521
        %v528 = vunpack.c.l.b16 %v515
        %v529 = vunpack.c.h.b16 %v515
        %v530 = vpack.c.b16 %v528, %v528
        %v531 = vpack.c.b16 %v529, %v529
        %532 = vrot.lane.b32.xlu0 %v530, 64
        %v533 = vpop.permute.xlu0 %532
        %534 = vrot.lane.b32.xlu0 %v531, 64
        %v535 = vpop.permute.xlu0 %534
        %538 = vst.msk [vmem:[%s344] sm:$0xf] %vm524, %v533
        %539 = vst.msk [vmem:[%s344 + $0x4] sm:$0xf] %vm524, %v535
        %v541 = vunpack.c.l.b16 %v516
        %v542 = vunpack.c.h.b16 %v516
        %v543 = vpack.c.b16 %v541, %v541
        %v544 = vpack.c.b16 %v542, %v542
        %547 = vst.msk [vmem:[%s351] sm:$0xf] %vm524, %v543
        %548 = vst.msk [vmem:[%s351 + $0x4] sm:$0xf] %vm524, %v544
        %549 = vrot.lane.b32.xlu0 %v520, 112
        %v550 = vpop.permute.xlu0 %549
        %551 = vrot.lane.b32.xlu0 %v521, 112
        %v552 = vpop.permute.xlu0 %551
        %s555 = scalar_lea.vmem %s337, 8 [#allocation7]
        %556 = vst.msk [vmem:[%s555] sm:$0xf] %vm524, %v550
        %557 = vst.msk [vmem:[%s555 + $0x4] sm:$0xf] %vm524, %v552
        %558 = vrot.lane.b32.xlu0 %v530, 48
        %v559 = vpop.permute.xlu0 %558
        %560 = vrot.lane.b32.xlu0 %v531, 48
        %v561 = vpop.permute.xlu0 %560
        %s564 = scalar_lea.vmem %s344, 8 [#allocation8]
        %565 = vst.msk [vmem:[%s564] sm:$0xf] %vm524, %v559
        %566 = vst.msk [vmem:[%s564 + $0x4] sm:$0xf] %vm524, %v561
        %567 = vrot.lane.b32.xlu0 %v543, 112
        %v568 = vpop.permute.xlu0 %567
        %569 = vrot.lane.b32.xlu0 %v544, 112
        %v570 = vpop.permute.xlu0 %569
        %s573 = scalar_lea.vmem %s351, 8 [#allocation10]
        %574 = vst.msk [vmem:[%s573] sm:$0xf] %vm524, %v568
        %575 = vst.msk [vmem:[%s573 + $0x4] sm:$0xf] %vm524, %v570
        %576 = vrot.lane.b32.xlu0 %v520, 96
        %v577 = vpop.permute.xlu0 %576
        %578 = vrot.lane.b32.xlu0 %v521, 96
        %v579 = vpop.permute.xlu0 %578
        %s582 = scalar_lea.vmem %s337, 16 [#allocation7]
        %583 = vst.msk [vmem:[%s582] sm:$0xf] %vm524, %v577
        %584 = vst.msk [vmem:[%s582 + $0x4] sm:$0xf] %vm524, %v579
        %585 = vrot.lane.b32.xlu0 %v530, 32
        %v586 = vpop.permute.xlu0 %585
        %587 = vrot.lane.b32.xlu0 %v531, 32
        %v588 = vpop.permute.xlu0 %587
        %s591 = scalar_lea.vmem %s344, 16 [#allocation8]
        %592 = vst.msk [vmem:[%s591] sm:$0xf] %vm524, %v586
        %593 = vst.msk [vmem:[%s591 + $0x4] sm:$0xf] %vm524, %v588
        %594 = vrot.lane.b32.xlu0 %v543, 96
        %v595 = vpop.permute.xlu0 %594
        %596 = vrot.lane.b32.xlu0 %v544, 96
        %v597 = vpop.permute.xlu0 %596
        %s600 = scalar_lea.vmem %s351, 16 [#allocation10]
        %601 = vst.msk [vmem:[%s600] sm:$0xf] %vm524, %v595
        %602 = vst.msk [vmem:[%s600 + $0x4] sm:$0xf] %vm524, %v597
        %603 = vrot.lane.b32.xlu0 %v520, 80
        %v604 = vpop.permute.xlu0 %603
        %605 = vrot.lane.b32.xlu0 %v521, 80
        %v606 = vpop.permute.xlu0 %605
        %s609 = scalar_lea.vmem %s337, 24 [#allocation7]
        %610 = vst.msk [vmem:[%s609] sm:$0xf] %vm524, %v604
        %611 = vst.msk [vmem:[%s609 + $0x4] sm:$0xf] %vm524, %v606
        %612 = vrot.lane.b32.xlu0 %v530, 16
        %v613 = vpop.permute.xlu0 %612
        %614 = vrot.lane.b32.xlu0 %v531, 16
        %v615 = vpop.permute.xlu0 %614
        %s618 = scalar_lea.vmem %s344, 24 [#allocation8]
        %619 = vst.msk [vmem:[%s618] sm:$0xf] %vm524, %v613
        %620 = vst.msk [vmem:[%s618 + $0x4] sm:$0xf] %vm524, %v615
        %621 = vrot.lane.b32.xlu0 %v543, 80
        %v622 = vpop.permute.xlu0 %621
        %623 = vrot.lane.b32.xlu0 %v544, 80
        %v624 = vpop.permute.xlu0 %623
        %s627 = scalar_lea.vmem %s351, 24 [#allocation10]
        %628 = vst.msk [vmem:[%s627] sm:$0xf] %vm524, %v622
        %629 = vst.msk [vmem:[%s627 + $0x4] sm:$0xf] %vm524, %v624
        %s630 = sand.u32 %s163, 1
        %s631 = scalar_lea.sflag [#allocation4], %s630
        %s632 = sand.u32 %s163, 1
        %s633 = smul.addr %s632, 32
        %s634 = scalar_lea.vmem [#allocation7], %s633
        %s635 = sand.u32 %s29, 1
        %s636 = scalar_lea.sflag [#allocation9], %s635
        %s637 = sand.u32 %s191, 1
        %s638 = smul.addr %s637, 32
        %s639 = scalar_lea.vmem [#allocation8], %s638
        %s640 = sand.u32 %s29, 1
        %s641 = scalar_lea.sflag [#allocation9], %s640
        %s642 = sand.u32 %s219, 1
        %s643 = smul.addr %s642, 32
        %s644 = scalar_lea.vmem [#allocation10], %s643
        // Predicated region
        $region49: #{tpu_custom_call.1} parent=39 // pred_check
          %p645 = pneg %p173
        $region50: #{tpu_custom_call.1} parent=39 // pred_check_branch
          %647 = sbr.rel (%p645) target = $region52
        $region51: #{tpu_custom_call.1} parent=39 // pred_region
          %s648 = smul.u32 2, %s34
          %s650 = ssub.s32 512, 512
          %651 = vsyncadd %s631, %s650
          %s652 = smul.addr %s33, 8
          %s653 = sadd.s32 %s648, %s652
          %s654 = smul.addr %s653, 64
          %s655 = scalar_lea.hbm %s5, %s654
          %s656 = sshll.u32 %s634, 4
          %s657 = int_to_ptr.vmem [resolvable:$true] %s656
          %662 = dma.vmem_to_hbm [thread:$0]  %s657, 512, %s655, %s631, 64, 64, 4
        $region52: #{tpu_custom_call.1} parent=39 // pred_fallthru
          _
        // Predicated region
        $region53: #{tpu_custom_call.1} parent=39 // pred_check
          %p663 = pneg %p201
        $region54: #{tpu_custom_call.1} parent=39 // pred_check_branch
          %665 = sbr.rel (%p663) target = $region56
        $region55: #{tpu_custom_call.1} parent=39 // pred_region
          %s666 = smul.u32 2, %s34
          %s668 = ssub.s32 512, 512
          %669 = vsyncadd %s636, %s668
          %s670 = smul.addr %s33, 8
          %s671 = sadd.s32 %s666, %s670
          %s672 = smul.addr %s671, 64
          %s673 = scalar_lea.hbm %s6, %s672
          %s674 = sshll.u32 %s639, 4
          %s675 = int_to_ptr.vmem [resolvable:$true] %s674
          %680 = dma.vmem_to_hbm [thread:$0]  %s675, 512, %s673, %s636, 64, 64, 4
        $region56: #{tpu_custom_call.1} parent=39 // pred_fallthru
          _
        // Predicated region
        $region57: #{tpu_custom_call.1} parent=39 // pred_check
          %p681 = pneg %p229
        $region58: #{tpu_custom_call.1} parent=39 // pred_check_branch
          %683 = sbr.rel (%p681) target = $region60
        $region59: #{tpu_custom_call.1} parent=39 // pred_region
          %s684 = smul.u32 2, %s34
          %s686 = ssub.s32 512, 512
          %687 = vsyncadd %s641, %s686
          %s688 = smul.addr %s33, 8
          %s689 = sadd.s32 %s684, %s688
          %s690 = smul.addr %s689, 64
          %s691 = scalar_lea.hbm %s7, %s690
          %s692 = sshll.u32 %s644, 4
          %s693 = int_to_ptr.vmem [resolvable:$true] %s692
          %698 = dma.vmem_to_hbm [thread:$0]  %s693, 512, %s691, %s641, 64, 64, 4
        $region60: #{tpu_custom_call.1} parent=39 // pred_fallthru
          _
      $region40: #{tpu_custom_call.1} parent=5 // pred_fallthru
        _
      %p699 = scmp.le.s32.totalorder 2, %s24
      // Predicated region
      $region61: #{tpu_custom_call.1} parent=5 // pred_check
        %p700 = pneg %p699
      $region62: #{tpu_custom_call.1} parent=5 // pred_check_branch
        %702 = sbr.rel (%p700) target = $region64
      $region63: #{tpu_custom_call.1} parent=5 // pred_region
        %s703 = ssub.s32 %s24, 2
        // Predicated region
        $region65: #{tpu_custom_call.1} parent=63 // pred_check
          %p704 = pneg %p179
        $region66: #{tpu_custom_call.1} parent=63 // pred_check_branch
          %706 = sbr.rel (%p704) target = $region68
        $region67: #{tpu_custom_call.1} parent=63 // pred_region
          %s707 = sand.u32 %s164, 1
          %s708 = scalar_lea.sflag [#allocation4], %s707
          %s709 = sand.u32 %s164, 1
          %s710 = smul.addr %s709, 32
          %s711 = scalar_lea.vmem [#allocation7], %s710
          %712 = dma.done %s708, 512
        $region68: #{tpu_custom_call.1} parent=63 // pred_fallthru
          _
        // Predicated region
        $region69: #{tpu_custom_call.1} parent=63 // pred_check
          %p713 = pneg %p207
        $region70: #{tpu_custom_call.1} parent=63 // pred_check_branch
          %715 = sbr.rel (%p713) target = $region72
        $region71: #{tpu_custom_call.1} parent=63 // pred_region
          %s716 = sand.u32 %s30, 1
          %s717 = scalar_lea.sflag [#allocation9], %s716
          %s718 = sand.u32 %s192, 1
          %s719 = smul.addr %s718, 32
          %s720 = scalar_lea.vmem [#allocation8], %s719
          %721 = dma.done %s717, 512
        $region72: #{tpu_custom_call.1} parent=63 // pred_fallthru
          _
        // Predicated region
        $region73: #{tpu_custom_call.1} parent=63 // pred_check
          %p722 = pneg %p235
        $region74: #{tpu_custom_call.1} parent=63 // pred_check_branch
          %724 = sbr.rel (%p722) target = $region76
        $region75: #{tpu_custom_call.1} parent=63 // pred_region
          %s725 = sand.u32 %s30, 1
          %s726 = scalar_lea.sflag [#allocation9], %s725
          %s727 = sand.u32 %s220, 1
          %s728 = smul.addr %s727, 32
          %s729 = scalar_lea.vmem [#allocation10], %s728
          %730 = dma.done %s726, 512
        $region76: #{tpu_custom_call.1} parent=63 // pred_fallthru
          _
      $region64: #{tpu_custom_call.1} parent=5 // pred_fallthru
        _
    $region6: #{tpu_custom_call.1} parent=1 // loop_footer
      %s28 = sadd.s32 1, %s24
    $region7: #{tpu_custom_call.1} parent=1 // loop_footer_branch
      %23 = sbr.rel target = $region3
    $region8: #{tpu_custom_call.1} parent=1 // loop_exit
      _
    %731 = vsyncpa [#allocation3], 1
    %s732 = scalar_lea.sflag [#allocation3], 1
    %733 = vsyncpa %s732, 1
    %734 = vsyncpa [#allocation6], 1
    %735 = vsyncpa [#allocation4], 1
    %s736 = scalar_lea.sflag [#allocation4], 1
    %737 = vsyncpa %s736, 1
    %738 = vsyncpa [#allocation9], 1
    %s739 = scalar_lea.sflag [#allocation9], 1
    %740 = vsyncpa %s739, 1

</llo_original>
